<compile_context>
chip_gen: v6e
topology: v6e:2x2x1
jax: 0.10.0
libtpu: 0.0.40
codegen_flags: <defaults>
</compile_context>

<pallas_src>
import jax
import jax.numpy as jnp
from jax.experimental import pallas as pl
from jax.experimental.pallas import tpu as pltpu


def _critic_kernel(sa_ref, w_in_ref, b_in_ref, w2_ref, w5_ref,
                   b_mid_ref, w_out_ref, b_out_ref, qt_ref):
    """Fused twin-Q forward for one batch tile.

    Layer 1: sa @ [w1 | w4]            -> [tb, 2H]   (heads fused on N axis)
    Layer 2: two dense [H, H] dots on the lane-sliced halves (no zero padding)
    Layer 3: per-head [H, 1] dots; result stored transposed as [2, tb]
             (lane-dense unmasked stores, contiguous output DMA).
    All MXU operands are bf16, accumulation is f32; biases stay f32.
    """
    cdt = w_in_ref.dtype                      # bf16 MXU operand dtype
    hidden = w2_ref.shape[0]                  # 256

    # ---- Layer 1 (both heads fused on the output axis) --------------------
    sa = sa_ref[...].astype(cdt)
    h = jnp.dot(sa, w_in_ref[...], preferred_element_type=jnp.float32)
    h = jnp.maximum(h + b_in_ref[...], 0.0)                   # [tb, 2H] f32

    # ---- Layer 2 (separate per-head weights; 256-lane slices are free) ----
    h1 = h[:, :hidden].astype(cdt)
    h2 = h[:, hidden:].astype(cdt)
    g1 = jnp.dot(h1, w2_ref[...], preferred_element_type=jnp.float32)
    g1 = jnp.maximum(g1 + b_mid_ref[0:1, :], 0.0)              # [tb, H]
    g2 = jnp.dot(h2, w5_ref[...], preferred_element_type=jnp.float32)
    g2 = jnp.maximum(g2 + b_mid_ref[1:2, :], 0.0)              # [tb, H]

    # ---- Layer 3 (per-head matvec) + lane-dense transposed store ----------
    q1 = jnp.dot(g1.astype(cdt), w_out_ref[:, 0:1],
                 preferred_element_type=jnp.float32)           # [tb, 1]
    q2 = jnp.dot(g2.astype(cdt), w_out_ref[:, 1:2],
                 preferred_element_type=jnp.float32)           # [tb, 1]
    q = jnp.concatenate([q1, q2], axis=1) + b_out_ref[...]     # [tb, 2]
    # Tiny transpose rides the otherwise-idle XLU slot; gives full-lane stores.
    qt_ref[...] = q.T.astype(qt_ref.dtype)                     # [2, tb]


# Rows per grid step.  2048 keeps f32 activations (+ bf16 cast copies and the
# double-buffered I/O tiles) comfortably inside every generation's scoped VMEM
# once vmem_limit_bytes is raised to 32 MiB (<= physical on v5e/v6e/v7x).
_MAX_BLOCK_B = 2048


def _pick_block_b(batch):
    if batch <= _MAX_BLOCK_B:
        return batch
    # Multi-tile case: round half the batch up to an MXU-friendly multiple of
    # 256 so the "parallel" grid axis splits evenly across 2 TensorCores
    # (v7x), capped at the VMEM-safe tile size.
    half = -(-batch // 2)
    return min(_MAX_BLOCK_B, -(-half // 256) * 256)


@jax.jit
def critic_forward(state, action, packed):
    """Pallas equivalent of Critic.forward(state, action) -> (q1, q2)."""
    batch = state.shape[0]
    sa = jnp.concatenate([state, action], axis=1)   # one DMA stream, one L1 dot
    sa_dim = sa.shape[1]

    block_b = _pick_block_b(batch)
    grid = (pl.cdiv(batch, block_b),)

    def resident(arr):
        # Full-array block with a constant index map: the weight stays
        # VMEM-resident across all batch tiles (no re-DMA per grid step).
        nd = arr.ndim
        return pl.BlockSpec(arr.shape, lambda i, _nd=nd: (0,) * _nd)

    in_specs = [
        pl.BlockSpec((block_b, sa_dim), lambda i: (i, 0)),
        resident(packed["w_in"]),
        resident(packed["b_in"]),
        resident(packed["w2"]),
        resident(packed["w5"]),
        resident(packed["b_mid"]),
        resident(packed["w_out"]),
        resident(packed["b_out"]),
    ]
    # Lane-dense transposed output: [2, B], block [2, block_b].
    out_specs = pl.BlockSpec((2, block_b), lambda i: (0, i))

    qt = pl.pallas_call(
        _critic_kernel,
        out_shape=jax.ShapeDtypeStruct((2, batch), jnp.float32),
        grid=grid,
        in_specs=in_specs,
        out_specs=out_specs,
        compiler_params=pltpu.CompilerParams(
            dimension_semantics=("parallel",),
            vmem_limit_bytes=32 * 1024 * 1024),
    )(sa, packed["w_in"], packed["b_in"], packed["w2"], packed["w5"],
      packed["b_mid"], packed["w_out"], packed["b_out"])

    return qt[0, :, None], qt[1, :, None]


def init_critic_params(key, state_dim, action_dim, hidden=256):
    """Synthetic init matching the nn.Linear shapes.

    PyTorch stores Linear weight as [out, in]; we keep [in, out] so the
    kernel computes x @ W + b.
    """
    sa_dim = state_dim + action_dim
    dims = [
        ("w1", (sa_dim, hidden)), ("b1", (1, hidden)),
        ("w2", (hidden, hidden)), ("b2", (1, hidden)),
        ("w3", (hidden, 1)),      ("b3", (1, 1)),
        ("w4", (sa_dim, hidden)), ("b4", (1, hidden)),
        ("w5", (hidden, hidden)), ("b5", (1, hidden)),
        ("w6", (hidden, 1)),      ("b6", (1, 1)),
    ]
    params = {}
    keys = jax.random.split(key, len(dims))
    for (name, shape), k in zip(dims, keys):
        fan_in = shape[0] if name.startswith("w") else shape[1]
        bound = 1.0 / jnp.sqrt(jnp.asarray(fan_in, jnp.float32))
        params[name] = jax.random.uniform(
            k, shape, jnp.float32, minval=-bound, maxval=bound)
    return params


def pack_critic_params(params, weight_dtype=jnp.bfloat16):
    """Pack the 12 per-layer tensors into 7 fused, lane-dense arrays.

    Done once outside the forward pass (pure layout plumbing).  Weights are
    stored in bf16 (MXU-native operand format, half the DMA bytes); biases
    stay f32 since they are added to the f32 accumulator.
    """
    return {
        "w_in":  jnp.concatenate([params["w1"], params["w4"]],
                                 axis=1).astype(weight_dtype),   # [SA, 2H]
        "b_in":  jnp.concatenate([params["b1"], params["b4"]], axis=1),  # [1, 2H]
        "w2":    params["w2"].astype(weight_dtype),              # [H, H]
        "w5":    params["w5"].astype(weight_dtype),              # [H, H]
        "b_mid": jnp.concatenate([params["b2"], params["b5"]], axis=0),  # [2, H]
        "w_out": jnp.concatenate([params["w3"], params["w6"]],
                                 axis=1).astype(weight_dtype),   # [H, 2]
        "b_out": jnp.concatenate([params["b3"], params["b6"]], axis=1),  # [1, 2]
    }


def critic_forward_ref(state, action, params):
    """Plain-JAX f32 reference (unfused, mirrors the PyTorch module exactly)."""
    sa = jnp.concatenate([state, action], axis=1)
    h = jax.nn.relu(sa @ params["w1"] + params["b1"])
    h = jax.nn.relu(h @ params["w2"] + params["b2"])
    q1 = h @ params["w3"] + params["b3"]
    g = jax.nn.relu(sa @ params["w4"] + params["b4"])
    g = jax.nn.relu(g @ params["w5"] + params["b5"])
    q2 = g @ params["w6"] + params["b6"]
    return q1, q2


if __name__ == "__main__":
    # Small, forward-consistent shapes: batch=8, state_dim=12, action_dim=4.
    B, STATE_DIM, ACTION_DIM = 8, 12, 4

    root = jax.random.PRNGKey(0)
    k_state, k_action, k_params = jax.random.split(root, 3)

    state = jax.random.normal(k_state, (B, STATE_DIM), jnp.float32)
    action = jax.random.normal(k_action, (B, ACTION_DIM), jnp.float32)
    params = init_critic_params(k_params, STATE_DIM, ACTION_DIM)
    packed = pack_critic_params(params)

    q1, q2 = critic_forward(state, action, packed)
    jax.block_until_ready((q1, q2))

    q1_ref, q2_ref = critic_forward_ref(state, action, params)
    assert q1.shape == (B, 1) and q2.shape == (B, 1)
    # bf16 MXU operands with f32 accumulation: tolerance relaxed vs pure f32.
    assert jnp.allclose(q1, q1_ref, atol=5e-2, rtol=5e-2), (
        float(jnp.max(jnp.abs(q1 - q1_ref))))
    assert jnp.allclose(q2, q2_ref, atol=5e-2, rtol=5e-2), (
        float(jnp.max(jnp.abs(q2 - q2_ref))))

    print("KERNEL_OK")
</pallas_src>

<mosaic_0001>
module attributes {stable_mosaic.version = 11 : i64} {
  func.func @_critic_kernel(%arg0: i32, %arg1: memref<8x16xf32, #tpu.memory_space<vmem>>, %arg2: memref<16x512xbf16, #tpu.memory_space<vmem>>, %arg3: memref<1x512xf32, #tpu.memory_space<vmem>>, %arg4: memref<256x256xbf16, #tpu.memory_space<vmem>>, %arg5: memref<256x256xbf16, #tpu.memory_space<vmem>>, %arg6: memref<2x256xf32, #tpu.memory_space<vmem>>, %arg7: memref<256x2xbf16, #tpu.memory_space<vmem>>, %arg8: memref<1x2xf32, #tpu.memory_space<vmem>>, %arg9: memref<2x8xf32, #tpu.memory_space<vmem>>) attributes {dimension_semantics = [#tpu.dimension_semantics<parallel>], iteration_bounds = array<i64: 1>, scalar_prefetch = 0 : i64, scratch_operands = 0 : i64, tpu.core_type = #tpu.core_type<tc>, window_params = [{transform_indices = @transform_0, window_bounds = array<i64: 8, 16>}, {pipeline_mode = #tpu.pipeline_mode<synchronous>, transform_indices = @transform_1, window_bounds = array<i64: 16, 512>}, {pipeline_mode = #tpu.pipeline_mode<synchronous>, transform_indices = @transform_2, window_bounds = array<i64: 1, 512>}, {pipeline_mode = #tpu.pipeline_mode<synchronous>, transform_indices = @transform_3, window_bounds = array<i64: 256, 256>}, {pipeline_mode = #tpu.pipeline_mode<synchronous>, transform_indices = @transform_4, window_bounds = array<i64: 256, 256>}, {pipeline_mode = #tpu.pipeline_mode<synchronous>, transform_indices = @transform_5, window_bounds = array<i64: 2, 256>}, {pipeline_mode = #tpu.pipeline_mode<synchronous>, transform_indices = @transform_6, window_bounds = array<i64: 256, 2>}, {pipeline_mode = #tpu.pipeline_mode<synchronous>, transform_indices = @transform_7, window_bounds = array<i64: 1, 2>}, {transform_indices = @transform_8, window_bounds = array<i64: 2, 8>}]} {
    %c0 = arith.constant 0 : index
    %c0_0 = arith.constant 0 : index
    %0 = vector.load %arg1[%c0, %c0_0] : memref<8x16xf32, #tpu.memory_space<vmem>>, vector<8x16xf32>
    %1 = arith.truncf %0 : vector<8x16xf32> to vector<8x16xbf16>
    %c0_1 = arith.constant 0 : index
    %c0_2 = arith.constant 0 : index
    %2 = vector.load %arg2[%c0_1, %c0_2] : memref<16x512xbf16, #tpu.memory_space<vmem>>, vector<16x512xbf16>
    %cst = arith.constant dense<0.000000e+00> : vector<8x512xf32>
    %3 = tpu.matmul %1, %2, %cst {dimension_numbers = #tpu.dot_dimension_numbers<[1], [0], [0], [1], [0, 0, 1, 1], [], []>} : vector<8x16xbf16>, vector<16x512xbf16>, vector<8x512xf32> -> vector<8x512xf32>
    %c0_3 = arith.constant 0 : index
    %c0_4 = arith.constant 0 : index
    %4 = vector.load %arg3[%c0_3, %c0_4] : memref<1x512xf32, #tpu.memory_space<vmem>>, vector<1x512xf32>
    %5 = vector.broadcast %4 : vector<1x512xf32> to vector<8x512xf32>
    %6 = arith.addf %3, %5 : vector<8x512xf32>
    %cst_5 = arith.constant 0.000000e+00 : f32
    %7 = vector.broadcast %cst_5 : f32 to vector<8x512xf32>
    %8 = arith.maximumf %6, %7 : vector<8x512xf32>
    %9 = vector.extract_strided_slice %8 {offsets = [0, 0], sizes = [8, 256], strides = [1, 1]} : vector<8x512xf32> to vector<8x256xf32>
    %10 = arith.truncf %9 : vector<8x256xf32> to vector<8x256xbf16>
    %11 = vector.extract_strided_slice %8 {offsets = [0, 256], sizes = [8, 256], strides = [1, 1]} : vector<8x512xf32> to vector<8x256xf32>
    %12 = arith.truncf %11 : vector<8x256xf32> to vector<8x256xbf16>
    %c0_6 = arith.constant 0 : index
    %c0_7 = arith.constant 0 : index
    %13 = vector.load %arg4[%c0_6, %c0_7] : memref<256x256xbf16, #tpu.memory_space<vmem>>, vector<256x256xbf16>
    %cst_8 = arith.constant dense<0.000000e+00> : vector<8x256xf32>
    %14 = tpu.matmul %10, %13, %cst_8 {dimension_numbers = #tpu.dot_dimension_numbers<[1], [0], [0], [1], [0, 0, 1, 1], [], []>} : vector<8x256xbf16>, vector<256x256xbf16>, vector<8x256xf32> -> vector<8x256xf32>
    %c0_9 = arith.constant 0 : index
    %c0_10 = arith.constant 0 : index
    %15 = vector.load %arg6[%c0_9, %c0_10] : memref<2x256xf32, #tpu.memory_space<vmem>>, vector<1x256xf32>
    %16 = vector.broadcast %15 : vector<1x256xf32> to vector<8x256xf32>
    %17 = arith.addf %14, %16 : vector<8x256xf32>
    %cst_11 = arith.constant 0.000000e+00 : f32
    %18 = vector.broadcast %cst_11 : f32 to vector<8x256xf32>
    %19 = arith.maximumf %17, %18 : vector<8x256xf32>
    %c0_12 = arith.constant 0 : index
    %c0_13 = arith.constant 0 : index
    %20 = vector.load %arg5[%c0_12, %c0_13] : memref<256x256xbf16, #tpu.memory_space<vmem>>, vector<256x256xbf16>
    %cst_14 = arith.constant dense<0.000000e+00> : vector<8x256xf32>
    %21 = tpu.matmul %12, %20, %cst_14 {dimension_numbers = #tpu.dot_dimension_numbers<[1], [0], [0], [1], [0, 0, 1, 1], [], []>} : vector<8x256xbf16>, vector<256x256xbf16>, vector<8x256xf32> -> vector<8x256xf32>
    %c1 = arith.constant 1 : index
    %c0_15 = arith.constant 0 : index
    %22 = vector.load %arg6[%c1, %c0_15] : memref<2x256xf32, #tpu.memory_space<vmem>>, vector<1x256xf32>
    %23 = vector.broadcast %22 : vector<1x256xf32> to vector<8x256xf32>
    %24 = arith.addf %21, %23 : vector<8x256xf32>
    %cst_16 = arith.constant 0.000000e+00 : f32
    %25 = vector.broadcast %cst_16 : f32 to vector<8x256xf32>
    %26 = arith.maximumf %24, %25 : vector<8x256xf32>
    %27 = arith.truncf %19 : vector<8x256xf32> to vector<8x256xbf16>
    %c0_17 = arith.constant 0 : index
    %c0_18 = arith.constant 0 : index
    %28 = vector.load %arg7[%c0_17, %c0_18] : memref<256x2xbf16, #tpu.memory_space<vmem>>, vector<256x1xbf16>
    %cst_19 = arith.constant dense<0.000000e+00> : vector<8x1xf32>
    %29 = tpu.matmul %27, %28, %cst_19 {dimension_numbers = #tpu.dot_dimension_numbers<[1], [0], [0], [1], [0, 0, 1, 1], [], []>} : vector<8x256xbf16>, vector<256x1xbf16>, vector<8x1xf32> -> vector<8x1xf32>
    %30 = arith.truncf %26 : vector<8x256xf32> to vector<8x256xbf16>
    %c0_20 = arith.constant 0 : index
    %c1_21 = arith.constant 1 : index
    %31 = vector.load %arg7[%c0_20, %c1_21] : memref<256x2xbf16, #tpu.memory_space<vmem>>, vector<256x1xbf16>
    %cst_22 = arith.constant dense<0.000000e+00> : vector<8x1xf32>
    %32 = tpu.matmul %30, %31, %cst_22 {dimension_numbers = #tpu.dot_dimension_numbers<[1], [0], [0], [1], [0, 0, 1, 1], [], []>} : vector<8x256xbf16>, vector<256x1xbf16>, vector<8x1xf32> -> vector<8x1xf32>
    %33 = tpu.concatenate %29, %32 in 1 : vector<8x1xf32>, vector<8x1xf32> -> vector<8x2xf32>
    %c0_23 = arith.constant 0 : index
    %c0_24 = arith.constant 0 : index
    %34 = vector.load %arg8[%c0_23, %c0_24] : memref<1x2xf32, #tpu.memory_space<vmem>>, vector<1x2xf32>
    %35 = vector.broadcast %34 : vector<1x2xf32> to vector<8x2xf32>
    %36 = arith.addf %33, %35 : vector<8x2xf32>
    %37 = tpu.transpose %36, [1, 0] : vector<8x2xf32> -> vector<2x8xf32>
    %c0_25 = arith.constant 0 : index
    %c0_26 = arith.constant 0 : index
    %38 = vector.load %arg9[%c0_25, %c0_26] : memref<2x8xf32, #tpu.memory_space<vmem>>, vector<2x8xf32>
    tpu.vector_store %arg9[%c0_25, %c0_26], %37 {strides = array<i32>} : memref<2x8xf32, #tpu.memory_space<vmem>>, vector<2x8xf32>,
    return
  }
  func.func @transform_0(%arg0: i32) -> (i32, i32) {
    %c0_i32 = arith.constant 0 : i32
    %c0_i32_0 = arith.constant 0 : i32
    return %arg0, %c0_i32 : i32, i32
  }
  func.func @transform_1(%arg0: i32) -> (i32, i32) {
    %c0_i32 = arith.constant 0 : i32
    %c0_i32_0 = arith.constant 0 : i32
    %c0_i32_1 = arith.constant 0 : i32
    return %c0_i32, %c0_i32_0 : i32, i32
  }
  func.func @transform_2(%arg0: i32) -> (i32, i32) {
    %c0_i32 = arith.constant 0 : i32
    %c0_i32_0 = arith.constant 0 : i32
    %c0_i32_1 = arith.constant 0 : i32
    return %c0_i32, %c0_i32_0 : i32, i32
  }
  func.func @transform_3(%arg0: i32) -> (i32, i32) {
    %c0_i32 = arith.constant 0 : i32
    %c0_i32_0 = arith.constant 0 : i32
    %c0_i32_1 = arith.constant 0 : i32
    return %c0_i32, %c0_i32_0 : i32, i32
  }
  func.func @transform_4(%arg0: i32) -> (i32, i32) {
    %c0_i32 = arith.constant 0 : i32
    %c0_i32_0 = arith.constant 0 : i32
    %c0_i32_1 = arith.constant 0 : i32
    return %c0_i32, %c0_i32_0 : i32, i32
  }
  func.func @transform_5(%arg0: i32) -> (i32, i32) {
    %c0_i32 = arith.constant 0 : i32
    %c0_i32_0 = arith.constant 0 : i32
    %c0_i32_1 = arith.constant 0 : i32
    return %c0_i32, %c0_i32_0 : i32, i32
  }
  func.func @transform_6(%arg0: i32) -> (i32, i32) {
    %c0_i32 = arith.constant 0 : i32
    %c0_i32_0 = arith.constant 0 : i32
    %c0_i32_1 = arith.constant 0 : i32
    return %c0_i32, %c0_i32_0 : i32, i32
  }
  func.func @transform_7(%arg0: i32) -> (i32, i32) {
    %c0_i32 = arith.constant 0 : i32
    %c0_i32_0 = arith.constant 0 : i32
    %c0_i32_1 = arith.constant 0 : i32
    return %c0_i32, %c0_i32_0 : i32, i32
  }
  func.func @transform_8(%arg0: i32) -> (i32, i32) {
    %c0_i32 = arith.constant 0 : i32
    %c0_i32_0 = arith.constant 0 : i32
    return %c0_i32, %arg0 : i32, i32
  }
}

</mosaic_0001>

<llo_original>
// kernel: critic_forward.1
$region0: #{critic_forward.1}
  #allocation0 [shape = 'u32[]', space=smem, size = 0x4, offset = 0x4, fixed_abs, tag = 'smem constant byte address 0x4 - core index']
  #allocation1 [shape = 'u32[144,128]{1,0:T(1,128)}', space=vmem, size = 0x12000, scoped, tag = 'internal scratch']
  %s0 = inlined_call_operand.vmem [shape: f32[8,16], index: 0, kind: input, shape index: {}]
  %s1 = inlined_call_operand.vmem [shape: bf16[16,512], index: 1, kind: input, shape index: {}]
  %s2 = inlined_call_operand.vmem [shape: f32[1,512], index: 2, kind: input, shape index: {}]
  %s3 = inlined_call_operand.hbm [shape: bf16[256,256], index: 3, kind: input, shape index: {}]
  %s4 = inlined_call_operand.hbm [shape: bf16[256,256], index: 4, kind: input, shape index: {}]
  %s5 = inlined_call_operand.vmem [shape: f32[2,256], index: 5, kind: input, shape index: {}]
  %s6 = inlined_call_operand.vmem [shape: bf16[256,2], index: 6, kind: input, shape index: {}]
  %s7 = inlined_call_operand.vmem [shape: f32[1,2], index: 7, kind: input, shape index: {}]
  %s8 = inlined_call_operand.vmem [shape: f32[2,8], index: 8, kind: output, shape index: {}]
  %s9 = sld [smem:[#allocation0]]
  $region50: #{critic_forward.1} parent=0
    _
  %s11 = ssub.s32 1, %s9
  %s12 = scalar_select 0, %s11, %s9
  $region1: #{critic_forward.1} parent=0
    #allocation2 [shape = 'u8[131072]{0}', space=vmem, size = 0x20000, scoped, tag = 'input window, operand 3, single buffered']
    #allocation3 [shape = 's32[1]{0}', space=sflag, size = 0x4, scoped, tag = 'scoped memory for critic_forward.1']
    #allocation4 [shape = 'u8[131072]{0}', space=vmem, size = 0x20000, scoped, tag = 'input window, operand 4, single buffered']
    #allocation5 [shape = 's32[1]{0}', space=sflag, size = 0x4, scoped, tag = 'scoped memory for critic_forward.1']
    %13 = vsyncpa [#allocation3], 0
    %14 = vsyncpa [#allocation5], 0
    // Predicated region
    $region2: #{critic_forward.1} parent=1 // pred_check
      _
    $region3: #{critic_forward.1} parent=1 // pred_check_branch
      %16 = sbr.rel (0) target = $region5
    $region4: #{critic_forward.1} parent=1 // pred_region
      _
    $region5: #{critic_forward.1} parent=1 // pred_fallthru
      _
    // Predicated region
    $region6: #{critic_forward.1} parent=1 // pred_check
      _
    $region7: #{critic_forward.1} parent=1 // pred_check_branch
      %18 = sbr.rel (0) target = $region9
    $region8: #{critic_forward.1} parent=1 // pred_region
      _
    $region9: #{critic_forward.1} parent=1 // pred_fallthru
      _
    // Predicated region
    $region10: #{critic_forward.1} parent=1 // pred_check
      _
    $region11: #{critic_forward.1} parent=1 // pred_check_branch
      %20 = sbr.rel (0) target = $region13
    $region12: #{critic_forward.1} parent=1 // pred_region
      _
    $region13: #{critic_forward.1} parent=1 // pred_fallthru
      _
    // Predicated region
    $region14: #{critic_forward.1} parent=1 // pred_check
      _
    $region15: #{critic_forward.1} parent=1 // pred_check_branch
      %22 = sbr.rel (0) target = $region17
    $region16: #{critic_forward.1} parent=1 // pred_region
      %s24 = ssub.s32 4096, 4096
      %25 = vsyncadd [#allocation3], %s24
      %s26 = sshll.u32 [#allocation2], 4
      %s27 = int_to_ptr.vmem [resolvable:$true] %s26
      %32 = dma.hbm_to_vmem [thread:$0]  %s3, 4096, %s27, [#allocation3], 128, 128, 8
    $region17: #{critic_forward.1} parent=1 // pred_fallthru
      _
    // Predicated region
    $region18: #{critic_forward.1} parent=1 // pred_check
      _
    $region19: #{critic_forward.1} parent=1 // pred_check_branch
      %34 = sbr.rel (0) target = $region21
    $region20: #{critic_forward.1} parent=1 // pred_region
      %s36 = ssub.s32 4096, 4096
      %37 = vsyncadd [#allocation5], %s36
      %s38 = sshll.u32 [#allocation4], 4
      %s39 = int_to_ptr.vmem [resolvable:$true] %s38
      %44 = dma.hbm_to_vmem [thread:$0]  %s4, 4096, %s39, [#allocation5], 128, 128, 8
    $region21: #{critic_forward.1} parent=1 // pred_fallthru
      _
    // Predicated region
    $region22: #{critic_forward.1} parent=1 // pred_check
      _
    $region23: #{critic_forward.1} parent=1 // pred_check_branch
      %46 = sbr.rel (0) target = $region25
    $region24: #{critic_forward.1} parent=1 // pred_region
      _
    $region25: #{critic_forward.1} parent=1 // pred_fallthru
      _
    // Predicated region
    $region26: #{critic_forward.1} parent=1 // pred_check
      _
    $region27: #{critic_forward.1} parent=1 // pred_check_branch
      %48 = sbr.rel (0) target = $region29
    $region28: #{critic_forward.1} parent=1 // pred_region
      _
    $region29: #{critic_forward.1} parent=1 // pred_fallthru
      _
    // Predicated region
    $region30: #{critic_forward.1} parent=1 // pred_check
      _
    $region31: #{critic_forward.1} parent=1 // pred_check_branch
      %50 = sbr.rel (0) target = $region33
    $region32: #{critic_forward.1} parent=1 // pred_region
      _
    $region33: #{critic_forward.1} parent=1 // pred_fallthru
      _
    // Predicated region
    $region34: #{critic_forward.1} parent=1 // pred_check
      _
    $region35: #{critic_forward.1} parent=1 // pred_check_branch
      %52 = sbr.rel (0) target = $region37
    $region36: #{critic_forward.1} parent=1 // pred_region
      %53 = dma.done [#allocation3], 4096
    $region37: #{critic_forward.1} parent=1 // pred_fallthru
      _
    // Predicated region
    $region38: #{critic_forward.1} parent=1 // pred_check
      _
    $region39: #{critic_forward.1} parent=1 // pred_check_branch
      %55 = sbr.rel (0) target = $region41
    $region40: #{critic_forward.1} parent=1 // pred_region
      %56 = dma.done [#allocation5], 4096
    $region41: #{critic_forward.1} parent=1 // pred_fallthru
      _
    %v58 = vld [vmem:[%s0] sm:$0xff]
    %v59 = vpack.c.bf16 %v58, %v58
    %v60 = vld [vmem:[%s1] sm:$0xff]
    %v61 = vld [vmem:[%s1 + $0x8] sm:$0xff]
    %v62 = vld [vmem:[%s1 + $0x10] sm:$0xff]
    %v63 = vld [vmem:[%s1 + $0x18] sm:$0xff]
    %v64 = vld [vmem:[%s2] sm:$0xf]
    %v66 = vlaneseq
    %v67 = vshrl.u32 %v66, 7
    %v68 = vsub.s32 0, %v67
    %v69 = vrot.slane %v64, %v68
    %v70 = vlaneseq
    %v71 = vshrl.u32 %v70, 7
    %v72 = vsub.s32 1, %v71
    %v73 = vrot.slane %v64, %v72
    %v74 = vlaneseq
    %v75 = vshrl.u32 %v74, 7
    %v76 = vsub.s32 2, %v75
    %v77 = vrot.slane %v64, %v76
    %v78 = vlaneseq
    %v79 = vshrl.u32 %v78, 7
    %v80 = vsub.s32 3, %v79
    %v81 = vrot.slane %v64, %v80
    %v90 = vunpack.c.l.b16 %v60
    %v91 = vunpack.c.h.b16 %v60
    %v92 = vunpack.c.l.b16 %v61
    %v93 = vunpack.c.h.b16 %v61
    %v94 = vunpack.c.l.b16 %v62
    %v95 = vunpack.c.h.b16 %v62
    %v96 = vunpack.c.l.b16 %v63
    %v97 = vunpack.c.h.b16 %v63
    %v98 = vpack.c.b16 %v94, %v90
    %v99 = vpack.c.b16 %v95, %v91
    %v100 = vpack.c.b16 %v96, %v92
    %v101 = vpack.c.b16 %v97, %v93
    %vm106 = vcmask 130048
    %v108 = vsel %vm106, %v59, 0
    %110 = vmatprep.subr.bf16.mxu0 0
    %111 = vmatpush1.bf16.msra.mxu0 0
    %112 = vmatprep.subr.bf16.mxu0 0
    %113 = vmatpush1.bf16.msra.mxu0 0
    %114 = vmatprep.subr.bf16.mxu0 0
    %115 = vmatpush1.bf16.msra.mxu0 0
    %116 = vmatprep.subr.bf16.mxu0 0
    %117 = vmatpush1.bf16.msra.mxu0 0
    %118 = vmatprep.subr.bf16.mxu0 0
    %119 = vmatpush1.bf16.msra.mxu0 0
    %120 = vmatprep.subr.bf16.mxu0 0
    %121 = vmatpush1.bf16.msra.mxu0 0
    %122 = vmatprep.subr.bf16.mxu0 0
    %123 = vmatpush1.bf16.msra.mxu0 0
    %124 = vmatprep.subr.bf16.mxu0 %v99
    %125 = vmatpush1.bf16.msra.mxu0 %v98
    %126 = vmatprep.subr.bf16.mxu0 0
    %127 = vmatpush2.bf16.msra.mxu0 0
    %128 = vmatprep.subr.bf16.mxu0 0
    %129 = vmatpush2.bf16.msra.mxu0 0
    %130 = vmatprep.subr.bf16.mxu0 0
    %131 = vmatpush2.bf16.msra.mxu0 0
    %132 = vmatprep.subr.bf16.mxu0 0
    %133 = vmatpush2.bf16.msra.mxu0 0
    %134 = vmatprep.subr.bf16.mxu0 0
    %135 = vmatpush2.bf16.msra.mxu0 0
    %136 = vmatprep.subr.bf16.mxu0 0
    %137 = vmatpush2.bf16.msra.mxu0 0
    %138 = vmatprep.subr.bf16.mxu0 0
    %139 = vmatpush2.bf16.msra.mxu0 0
    %140 = vmatprep.subr.bf16.mxu0 0
    %141 = vmatpush2.bf16.msra.mxu0 0
    %142 = vmatprep.mubr.bf16.mxu0 0
    %143 = vmatmul.mubr.bf16.gmra.mxu0 %v108
    %v144 = vpop.f32.mrf.mxu0
    %v145 = vadd.f32 %v69, %v144
    %v146 = vpop.f32.mrf.mxu0
    %v147 = vadd.f32 %v73, %v146
    %v148 = vpop.f32.mrf.mxu0
    %v149 = vpop.f32.mrf.mxu0
    %150 = vdwg.mxu0
    %151 = vmatprep.subr.bf16.mxu0 0
    %152 = vmatpush1.bf16.msra.mxu0 0
    %153 = vmatprep.subr.bf16.mxu0 0
    %154 = vmatpush1.bf16.msra.mxu0 0
    %155 = vmatprep.subr.bf16.mxu0 0
    %156 = vmatpush1.bf16.msra.mxu0 0
    %157 = vmatprep.subr.bf16.mxu0 0
    %158 = vmatpush1.bf16.msra.mxu0 0
    %159 = vmatprep.subr.bf16.mxu0 0
    %160 = vmatpush1.bf16.msra.mxu0 0
    %161 = vmatprep.subr.bf16.mxu0 0
    %162 = vmatpush1.bf16.msra.mxu0 0
    %163 = vmatprep.subr.bf16.mxu0 0
    %164 = vmatpush1.bf16.msra.mxu0 0
    %165 = vmatprep.subr.bf16.mxu0 %v101
    %166 = vmatpush1.bf16.msra.mxu0 %v100
    %167 = vmatprep.subr.bf16.mxu0 0
    %168 = vmatpush2.bf16.msra.mxu0 0
    %169 = vmatprep.subr.bf16.mxu0 0
    %170 = vmatpush2.bf16.msra.mxu0 0
    %171 = vmatprep.subr.bf16.mxu0 0
    %172 = vmatpush2.bf16.msra.mxu0 0
    %173 = vmatprep.subr.bf16.mxu0 0
    %174 = vmatpush2.bf16.msra.mxu0 0
    %175 = vmatprep.subr.bf16.mxu0 0
    %176 = vmatpush2.bf16.msra.mxu0 0
    %177 = vmatprep.subr.bf16.mxu0 0
    %178 = vmatpush2.bf16.msra.mxu0 0
    %179 = vmatprep.subr.bf16.mxu0 0
    %180 = vmatpush2.bf16.msra.mxu0 0
    %181 = vmatprep.subr.bf16.mxu0 0
    %182 = vmatpush2.bf16.msra.mxu0 0
    %183 = vmatprep.mubr.bf16.mxu0 0
    %184 = vmatmul.mubr.bf16.gmra.mxu0 %v108
    %v185 = vpop.f32.mrf.mxu0
    %v186 = vadd.f32 %v77, %v185
    %v187 = vpop.f32.mrf.mxu0
    %v188 = vadd.f32 %v81, %v187
    %v189 = vpop.f32.mrf.mxu0
    %v190 = vpop.f32.mrf.mxu0
    %191 = vdwg.mxu0
    %v192 = vmax.f32 %v145, 0.0
    %v193 = vmax.f32 %v147, 0.0
    %v194 = vmax.f32 %v186, 0.0
    %v195 = vmax.f32 %v188, 0.0
    %v196 = vpack.c.bf16 %v192, %v192
    %v197 = vpack.c.bf16 %v193, %v193
    %v198 = vpack.c.bf16 %v194, %v194
    %v199 = vpack.c.bf16 %v195, %v195
    %v200 = vld [vmem:[#allocation2] sm:$0xff]
    %v201 = vld [vmem:[#allocation2 + $0x8] sm:$0xff]
    %v202 = vld [vmem:[#allocation2 + $0x10] sm:$0xff]
    %v203 = vld [vmem:[#allocation2 + $0x18] sm:$0xff]
    %v204 = vld [vmem:[#allocation2 + $0x20] sm:$0xff]
    %v205 = vld [vmem:[#allocation2 + $0x28] sm:$0xff]
    %v206 = vld [vmem:[#allocation2 + $0x30] sm:$0xff]
    %v207 = vld [vmem:[#allocation2 + $0x38] sm:$0xff]
    %v208 = vld [vmem:[#allocation2 + $0x40] sm:$0xff]
    %v209 = vld [vmem:[#allocation2 + $0x48] sm:$0xff]
    %v210 = vld [vmem:[#allocation2 + $0x50] sm:$0xff]
    %v211 = vld [vmem:[#allocation2 + $0x58] sm:$0xff]
    %v212 = vld [vmem:[#allocation2 + $0x60] sm:$0xff]
    %v213 = vld [vmem:[#allocation2 + $0x68] sm:$0xff]
    %v214 = vld [vmem:[#allocation2 + $0x70] sm:$0xff]
    %v215 = vld [vmem:[#allocation2 + $0x78] sm:$0xff]
    %v216 = vld [vmem:[#allocation2 + $0x80] sm:$0xff]
    %v217 = vld [vmem:[#allocation2 + $0x88] sm:$0xff]
    %v218 = vld [vmem:[#allocation2 + $0x90] sm:$0xff]
    %v219 = vld [vmem:[#allocation2 + $0x98] sm:$0xff]
    %v220 = vld [vmem:[#allocation2 + $0xa0] sm:$0xff]
    %v221 = vld [vmem:[#allocation2 + $0xa8] sm:$0xff]
    %v222 = vld [vmem:[#allocation2 + $0xb0] sm:$0xff]
    %v223 = vld [vmem:[#allocation2 + $0xb8] sm:$0xff]
    %v224 = vld [vmem:[#allocation2 + $0xc0] sm:$0xff]
    %v225 = vld [vmem:[#allocation2 + $0xc8] sm:$0xff]
    %v226 = vld [vmem:[#allocation2 + $0xd0] sm:$0xff]
    %v227 = vld [vmem:[#allocation2 + $0xd8] sm:$0xff]
    %v228 = vld [vmem:[#allocation2 + $0xe0] sm:$0xff]
    %v229 = vld [vmem:[#allocation2 + $0xe8] sm:$0xff]
    %v230 = vld [vmem:[#allocation2 + $0xf0] sm:$0xff]
    %v231 = vld [vmem:[#allocation2 + $0xf8] sm:$0xff]
    %v232 = vld [vmem:[%s5] ss:$2 sm:$0x3]
    %v234 = vlaneseq
    %v235 = vshrl.u32 %v234, 7
    %v236 = vsub.s32 0, %v235
    %v237 = vrot.slane %v232, %v236
    %v238 = vlaneseq
    %v239 = vshrl.u32 %v238, 7
    %v240 = vsub.s32 1, %v239
    %v241 = vrot.slane %v232, %v240
    %v276 = vunpack.c.l.b16 %v200
    %v277 = vunpack.c.h.b16 %v200
    %v278 = vunpack.c.l.b16 %v201
    %v279 = vunpack.c.h.b16 %v201
    %v280 = vunpack.c.l.b16 %v202
    %v281 = vunpack.c.h.b16 %v202
    %v282 = vunpack.c.l.b16 %v203
    %v283 = vunpack.c.h.b16 %v203
    %v284 = vunpack.c.l.b16 %v204
    %v285 = vunpack.c.h.b16 %v204
    %v286 = vunpack.c.l.b16 %v205
    %v287 = vunpack.c.h.b16 %v205
    %v288 = vunpack.c.l.b16 %v206
    %v289 = vunpack.c.h.b16 %v206
    %v290 = vunpack.c.l.b16 %v207
    %v291 = vunpack.c.h.b16 %v207
    %v292 = vunpack.c.l.b16 %v208
    %v293 = vunpack.c.h.b16 %v208
    %v294 = vunpack.c.l.b16 %v209
    %v295 = vunpack.c.h.b16 %v209
    %v296 = vunpack.c.l.b16 %v210
    %v297 = vunpack.c.h.b16 %v210
    %v298 = vunpack.c.l.b16 %v211
    %v299 = vunpack.c.h.b16 %v211
    %v300 = vunpack.c.l.b16 %v212
    %v301 = vunpack.c.h.b16 %v212
    %v302 = vunpack.c.l.b16 %v213
    %v303 = vunpack.c.h.b16 %v213
    %v304 = vunpack.c.l.b16 %v214
    %v305 = vunpack.c.h.b16 %v214
    %v306 = vunpack.c.l.b16 %v215
    %v307 = vunpack.c.h.b16 %v215
    %v308 = vunpack.c.l.b16 %v216
    %v309 = vunpack.c.h.b16 %v216
    %v310 = vunpack.c.l.b16 %v217
    %v311 = vunpack.c.h.b16 %v217
    %v312 = vunpack.c.l.b16 %v218
    %v313 = vunpack.c.h.b16 %v218
    %v314 = vunpack.c.l.b16 %v219
    %v315 = vunpack.c.h.b16 %v219
    %v316 = vunpack.c.l.b16 %v220
    %v317 = vunpack.c.h.b16 %v220
    %v318 = vunpack.c.l.b16 %v221
    %v319 = vunpack.c.h.b16 %v221
    %v320 = vunpack.c.l.b16 %v222
    %v321 = vunpack.c.h.b16 %v222
    %v322 = vunpack.c.l.b16 %v223
    %v323 = vunpack.c.h.b16 %v223
    %v324 = vunpack.c.l.b16 %v224
    %v325 = vunpack.c.h.b16 %v224
    %v326 = vunpack.c.l.b16 %v225
    %v327 = vunpack.c.h.b16 %v225
    %v328 = vunpack.c.l.b16 %v226
    %v329 = vunpack.c.h.b16 %v226
    %v330 = vunpack.c.l.b16 %v227
    %v331 = vunpack.c.h.b16 %v227
    %v332 = vunpack.c.l.b16 %v228
    %v333 = vunpack.c.h.b16 %v228
    %v334 = vunpack.c.l.b16 %v229
    %v335 = vunpack.c.h.b16 %v229
    %v336 = vunpack.c.l.b16 %v230
    %v337 = vunpack.c.h.b16 %v230
    %v338 = vunpack.c.l.b16 %v231
    %v339 = vunpack.c.h.b16 %v231
    %v340 = vpack.c.b16 %v278, %v276
    %v341 = vpack.c.b16 %v279, %v277
    %v342 = vpack.c.b16 %v282, %v280
    %v343 = vpack.c.b16 %v283, %v281
    %v344 = vpack.c.b16 %v286, %v284
    %v345 = vpack.c.b16 %v287, %v285
    %v346 = vpack.c.b16 %v290, %v288
    %v347 = vpack.c.b16 %v291, %v289
    %v348 = vpack.c.b16 %v294, %v292
    %v349 = vpack.c.b16 %v295, %v293
    %v350 = vpack.c.b16 %v298, %v296
    %v351 = vpack.c.b16 %v299, %v297
    %v352 = vpack.c.b16 %v302, %v300
    %v353 = vpack.c.b16 %v303, %v301
    %v354 = vpack.c.b16 %v306, %v304
    %v355 = vpack.c.b16 %v307, %v305
    %v356 = vpack.c.b16 %v310, %v308
    %v357 = vpack.c.b16 %v311, %v309
    %v358 = vpack.c.b16 %v314, %v312
    %v359 = vpack.c.b16 %v315, %v313
    %v360 = vpack.c.b16 %v318, %v316
    %v361 = vpack.c.b16 %v319, %v317
    %v362 = vpack.c.b16 %v322, %v320
    %v363 = vpack.c.b16 %v323, %v321
    %v364 = vpack.c.b16 %v326, %v324
    %v365 = vpack.c.b16 %v327, %v325
    %v366 = vpack.c.b16 %v330, %v328
    %v367 = vpack.c.b16 %v331, %v329
    %v368 = vpack.c.b16 %v334, %v332
    %v369 = vpack.c.b16 %v335, %v333
    %v370 = vpack.c.b16 %v338, %v336
    %v371 = vpack.c.b16 %v339, %v337
    %404 = vmatprep.subr.bf16.mxu0 %v355
    %405 = vmatpush1.bf16.msra.mxu0 %v354
    %406 = vmatprep.subr.bf16.mxu0 %v353
    %407 = vmatpush1.bf16.msra.mxu0 %v352
    %408 = vmatprep.subr.bf16.mxu0 %v351
    %409 = vmatpush1.bf16.msra.mxu0 %v350
    %410 = vmatprep.subr.bf16.mxu0 %v349
    %411 = vmatpush1.bf16.msra.mxu0 %v348
    %412 = vmatprep.subr.bf16.mxu0 %v347
    %413 = vmatpush1.bf16.msra.mxu0 %v346
    %414 = vmatprep.subr.bf16.mxu0 %v345
    %415 = vmatpush1.bf16.msra.mxu0 %v344
    %416 = vmatprep.subr.bf16.mxu0 %v343
    %417 = vmatpush1.bf16.msra.mxu0 %v342
    %418 = vmatprep.subr.bf16.mxu0 %v341
    %419 = vmatpush1.bf16.msra.mxu0 %v340
    %420 = vmatprep.subr.bf16.mxu0 %v371
    %421 = vmatpush2.bf16.msra.mxu0 %v370
    %422 = vmatprep.subr.bf16.mxu0 %v369
    %423 = vmatpush2.bf16.msra.mxu0 %v368
    %424 = vmatprep.subr.bf16.mxu0 %v367
    %425 = vmatpush2.bf16.msra.mxu0 %v366
    %426 = vmatprep.subr.bf16.mxu0 %v365
    %427 = vmatpush2.bf16.msra.mxu0 %v364
    %428 = vmatprep.subr.bf16.mxu0 %v363
    %429 = vmatpush2.bf16.msra.mxu0 %v362
    %430 = vmatprep.subr.bf16.mxu0 %v361
    %431 = vmatpush2.bf16.msra.mxu0 %v360
    %432 = vmatprep.subr.bf16.mxu0 %v359
    %433 = vmatpush2.bf16.msra.mxu0 %v358
    %434 = vmatprep.subr.bf16.mxu0 %v357
    %435 = vmatpush2.bf16.msra.mxu0 %v356
    %436 = vmatprep.mubr.bf16.mxu0 %v197
    %437 = vmatmul.mubr.bf16.gmra.mxu0 %v196
    %v438 = vpop.f32.mrf.mxu0
    %v439 = vadd.f32 %v237, %v438
    %v440 = vpop.f32.mrf.mxu0
    %v441 = vadd.f32 %v241, %v440
    %v442 = vpop.f32.mrf.mxu0
    %v443 = vpop.f32.mrf.mxu0
    %444 = vdwg.mxu0
    %v445 = vmax.f32 %v439, 0.0
    %v446 = vmax.f32 %v441, 0.0
    %v447 = vld [vmem:[#allocation4] sm:$0xff]
    %v448 = vld [vmem:[#allocation4 + $0x8] sm:$0xff]
    %v449 = vld [vmem:[#allocation4 + $0x10] sm:$0xff]
    %v450 = vld [vmem:[#allocation4 + $0x18] sm:$0xff]
    %v451 = vld [vmem:[#allocation4 + $0x20] sm:$0xff]
    %v452 = vld [vmem:[#allocation4 + $0x28] sm:$0xff]
    %v453 = vld [vmem:[#allocation4 + $0x30] sm:$0xff]
    %v454 = vld [vmem:[#allocation4 + $0x38] sm:$0xff]
    %v455 = vld [vmem:[#allocation4 + $0x40] sm:$0xff]
    %v456 = vld [vmem:[#allocation4 + $0x48] sm:$0xff]
    %v457 = vld [vmem:[#allocation4 + $0x50] sm:$0xff]
    %v458 = vld [vmem:[#allocation4 + $0x58] sm:$0xff]
    %v459 = vld [vmem:[#allocation4 + $0x60] sm:$0xff]
    %v460 = vld [vmem:[#allocation4 + $0x68] sm:$0xff]
    %v461 = vld [vmem:[#allocation4 + $0x70] sm:$0xff]
    %v462 = vld [vmem:[#allocation4 + $0x78] sm:$0xff]
    %v463 = vld [vmem:[#allocation4 + $0x80] sm:$0xff]
    %v464 = vld [vmem:[#allocation4 + $0x88] sm:$0xff]
    %v465 = vld [vmem:[#allocation4 + $0x90] sm:$0xff]
    %v466 = vld [vmem:[#allocation4 + $0x98] sm:$0xff]
    %v467 = vld [vmem:[#allocation4 + $0xa0] sm:$0xff]
    %v468 = vld [vmem:[#allocation4 + $0xa8] sm:$0xff]
    %v469 = vld [vmem:[#allocation4 + $0xb0] sm:$0xff]
    %v470 = vld [vmem:[#allocation4 + $0xb8] sm:$0xff]
    %v471 = vld [vmem:[#allocation4 + $0xc0] sm:$0xff]
    %v472 = vld [vmem:[#allocation4 + $0xc8] sm:$0xff]
    %v473 = vld [vmem:[#allocation4 + $0xd0] sm:$0xff]
    %v474 = vld [vmem:[#allocation4 + $0xd8] sm:$0xff]
    %v475 = vld [vmem:[#allocation4 + $0xe0] sm:$0xff]
    %v476 = vld [vmem:[#allocation4 + $0xe8] sm:$0xff]
    %v477 = vld [vmem:[#allocation4 + $0xf0] sm:$0xff]
    %v478 = vld [vmem:[#allocation4 + $0xf8] sm:$0xff]
    %s479 = scalar_lea.vmem %s5, 1
    %v480 = vld [vmem:[%s479] ss:$2 sm:$0x3]
    %v482 = vlaneseq
    %v483 = vshrl.u32 %v482, 7
    %v484 = vsub.s32 0, %v483
    %v485 = vrot.slane %v480, %v484
    %v486 = vlaneseq
    %v487 = vshrl.u32 %v486, 7
    %v488 = vsub.s32 1, %v487
    %v489 = vrot.slane %v480, %v488
    %v524 = vunpack.c.l.b16 %v447
    %v525 = vunpack.c.h.b16 %v447
    %v526 = vunpack.c.l.b16 %v448
    %v527 = vunpack.c.h.b16 %v448
    %v528 = vunpack.c.l.b16 %v449
    %v529 = vunpack.c.h.b16 %v449
    %v530 = vunpack.c.l.b16 %v450
    %v531 = vunpack.c.h.b16 %v450
    %v532 = vunpack.c.l.b16 %v451
    %v533 = vunpack.c.h.b16 %v451
    %v534 = vunpack.c.l.b16 %v452
    %v535 = vunpack.c.h.b16 %v452
    %v536 = vunpack.c.l.b16 %v453
    %v537 = vunpack.c.h.b16 %v453
    %v538 = vunpack.c.l.b16 %v454
    %v539 = vunpack.c.h.b16 %v454
    %v540 = vunpack.c.l.b16 %v455
    %v541 = vunpack.c.h.b16 %v455
    %v542 = vunpack.c.l.b16 %v456
    %v543 = vunpack.c.h.b16 %v456
    %v544 = vunpack.c.l.b16 %v457
    %v545 = vunpack.c.h.b16 %v457
    %v546 = vunpack.c.l.b16 %v458
    %v547 = vunpack.c.h.b16 %v458
    %v548 = vunpack.c.l.b16 %v459
    %v549 = vunpack.c.h.b16 %v459
    %v550 = vunpack.c.l.b16 %v460
    %v551 = vunpack.c.h.b16 %v460
    %v552 = vunpack.c.l.b16 %v461
    %v553 = vunpack.c.h.b16 %v461
    %v554 = vunpack.c.l.b16 %v462
    %v555 = vunpack.c.h.b16 %v462
    %v556 = vunpack.c.l.b16 %v463
    %v557 = vunpack.c.h.b16 %v463
    %v558 = vunpack.c.l.b16 %v464
    %v559 = vunpack.c.h.b16 %v464
    %v560 = vunpack.c.l.b16 %v465
    %v561 = vunpack.c.h.b16 %v465
    %v562 = vunpack.c.l.b16 %v466
    %v563 = vunpack.c.h.b16 %v466
    %v564 = vunpack.c.l.b16 %v467
    %v565 = vunpack.c.h.b16 %v467
    %v566 = vunpack.c.l.b16 %v468
    %v567 = vunpack.c.h.b16 %v468
    %v568 = vunpack.c.l.b16 %v469
    %v569 = vunpack.c.h.b16 %v469
    %v570 = vunpack.c.l.b16 %v470
    %v571 = vunpack.c.h.b16 %v470
    %v572 = vunpack.c.l.b16 %v471
    %v573 = vunpack.c.h.b16 %v471
    %v574 = vunpack.c.l.b16 %v472
    %v575 = vunpack.c.h.b16 %v472
    %v576 = vunpack.c.l.b16 %v473
    %v577 = vunpack.c.h.b16 %v473
    %v578 = vunpack.c.l.b16 %v474
    %v579 = vunpack.c.h.b16 %v474
    %v580 = vunpack.c.l.b16 %v475
    %v581 = vunpack.c.h.b16 %v475
    %v582 = vunpack.c.l.b16 %v476
    %v583 = vunpack.c.h.b16 %v476
    %v584 = vunpack.c.l.b16 %v477
    %v585 = vunpack.c.h.b16 %v477
    %v586 = vunpack.c.l.b16 %v478
    %v587 = vunpack.c.h.b16 %v478
    %v588 = vpack.c.b16 %v526, %v524
    %v589 = vpack.c.b16 %v527, %v525
    %v590 = vpack.c.b16 %v530, %v528
    %v591 = vpack.c.b16 %v531, %v529
    %v592 = vpack.c.b16 %v534, %v532
    %v593 = vpack.c.b16 %v535, %v533
    %v594 = vpack.c.b16 %v538, %v536
    %v595 = vpack.c.b16 %v539, %v537
    %v596 = vpack.c.b16 %v542, %v540
    %v597 = vpack.c.b16 %v543, %v541
    %v598 = vpack.c.b16 %v546, %v544
    %v599 = vpack.c.b16 %v547, %v545
    %v600 = vpack.c.b16 %v550, %v548
    %v601 = vpack.c.b16 %v551, %v549
    %v602 = vpack.c.b16 %v554, %v552
    %v603 = vpack.c.b16 %v555, %v553
    %v604 = vpack.c.b16 %v558, %v556
    %v605 = vpack.c.b16 %v559, %v557
    %v606 = vpack.c.b16 %v562, %v560
    %v607 = vpack.c.b16 %v563, %v561
    %v608 = vpack.c.b16 %v566, %v564
    %v609 = vpack.c.b16 %v567, %v565
    %v610 = vpack.c.b16 %v570, %v568
    %v611 = vpack.c.b16 %v571, %v569
    %v612 = vpack.c.b16 %v574, %v572
    %v613 = vpack.c.b16 %v575, %v573
    %v614 = vpack.c.b16 %v578, %v576
    %v615 = vpack.c.b16 %v579, %v577
    %v616 = vpack.c.b16 %v582, %v580
    %v617 = vpack.c.b16 %v583, %v581
    %v618 = vpack.c.b16 %v586, %v584
    %v619 = vpack.c.b16 %v587, %v585
    %652 = vmatprep.subr.bf16.mxu0 %v603
    %653 = vmatpush1.bf16.msra.mxu0 %v602
    %654 = vmatprep.subr.bf16.mxu0 %v601
    %655 = vmatpush1.bf16.msra.mxu0 %v600
    %656 = vmatprep.subr.bf16.mxu0 %v599
    %657 = vmatpush1.bf16.msra.mxu0 %v598
    %658 = vmatprep.subr.bf16.mxu0 %v597
    %659 = vmatpush1.bf16.msra.mxu0 %v596
    %660 = vmatprep.subr.bf16.mxu0 %v595
    %661 = vmatpush1.bf16.msra.mxu0 %v594
    %662 = vmatprep.subr.bf16.mxu0 %v593
    %663 = vmatpush1.bf16.msra.mxu0 %v592
    %664 = vmatprep.subr.bf16.mxu0 %v591
    %665 = vmatpush1.bf16.msra.mxu0 %v590
    %666 = vmatprep.subr.bf16.mxu0 %v589
    %667 = vmatpush1.bf16.msra.mxu0 %v588
    %668 = vmatprep.subr.bf16.mxu0 %v619
    %669 = vmatpush2.bf16.msra.mxu0 %v618
    %670 = vmatprep.subr.bf16.mxu0 %v617
    %671 = vmatpush2.bf16.msra.mxu0 %v616
    %672 = vmatprep.subr.bf16.mxu0 %v615
    %673 = vmatpush2.bf16.msra.mxu0 %v614
    %674 = vmatprep.subr.bf16.mxu0 %v613
    %675 = vmatpush2.bf16.msra.mxu0 %v612
    %676 = vmatprep.subr.bf16.mxu0 %v611
    %677 = vmatpush2.bf16.msra.mxu0 %v610
    %678 = vmatprep.subr.bf16.mxu0 %v609
    %679 = vmatpush2.bf16.msra.mxu0 %v608
    %680 = vmatprep.subr.bf16.mxu0 %v607
    %681 = vmatpush2.bf16.msra.mxu0 %v606
    %682 = vmatprep.subr.bf16.mxu0 %v605
    %683 = vmatpush2.bf16.msra.mxu0 %v604
    %684 = vmatprep.mubr.bf16.mxu0 %v199
    %685 = vmatmul.mubr.bf16.gmra.mxu0 %v198
    %v686 = vpop.f32.mrf.mxu0
    %v687 = vadd.f32 %v485, %v686
    %v688 = vpop.f32.mrf.mxu0
    %v689 = vadd.f32 %v489, %v688
    %v690 = vpop.f32.mrf.mxu0
    %v691 = vpop.f32.mrf.mxu0
    %692 = vdwg.mxu0
    %v693 = vmax.f32 %v687, 0.0
    %v694 = vmax.f32 %v689, 0.0
    %v695 = vpack.c.bf16 %v445, %v445
    %v696 = vpack.c.bf16 %v446, %v446
    %v697 = vld [vmem:[%s6] sm:$0xf]
    %v698 = vld [vmem:[%s6 + $0x4] sm:$0xf]
    %v699 = vld [vmem:[%s6 + $0x8] sm:$0xf]
    %v700 = vld [vmem:[%s6 + $0xc] sm:$0xf]
    %v701 = vld [vmem:[%s6 + $0x10] sm:$0xf]
    %v702 = vld [vmem:[%s6 + $0x14] sm:$0xf]
    %v703 = vld [vmem:[%s6 + $0x18] sm:$0xf]
    %v704 = vld [vmem:[%s6 + $0x1c] sm:$0xf]
    %v705 = vld [vmem:[%s6 + $0x20] sm:$0xf]
    %v706 = vld [vmem:[%s6 + $0x24] sm:$0xf]
    %v707 = vld [vmem:[%s6 + $0x28] sm:$0xf]
    %v708 = vld [vmem:[%s6 + $0x2c] sm:$0xf]
    %v709 = vld [vmem:[%s6 + $0x30] sm:$0xf]
    %v710 = vld [vmem:[%s6 + $0x34] sm:$0xf]
    %v711 = vld [vmem:[%s6 + $0x38] sm:$0xf]
    %v712 = vld [vmem:[%s6 + $0x3c] sm:$0xf]
    %v713 = vld [vmem:[%s6 + $0x40] sm:$0xf]
    %v714 = vld [vmem:[%s6 + $0x44] sm:$0xf]
    %v715 = vld [vmem:[%s6 + $0x48] sm:$0xf]
    %v716 = vld [vmem:[%s6 + $0x4c] sm:$0xf]
    %v717 = vld [vmem:[%s6 + $0x50] sm:$0xf]
    %v718 = vld [vmem:[%s6 + $0x54] sm:$0xf]
    %v719 = vld [vmem:[%s6 + $0x58] sm:$0xf]
    %v720 = vld [vmem:[%s6 + $0x5c] sm:$0xf]
    %v721 = vld [vmem:[%s6 + $0x60] sm:$0xf]
    %v722 = vld [vmem:[%s6 + $0x64] sm:$0xf]
    %v723 = vld [vmem:[%s6 + $0x68] sm:$0xf]
    %v724 = vld [vmem:[%s6 + $0x6c] sm:$0xf]
    %v725 = vld [vmem:[%s6 + $0x70] sm:$0xf]
    %v726 = vld [vmem:[%s6 + $0x74] sm:$0xf]
    %v727 = vld [vmem:[%s6 + $0x78] sm:$0xf]
    %v728 = vld [vmem:[%s6 + $0x7c] sm:$0xf]
    %v761 = vunpack.c.l.b16 %v697
    %v762 = vunpack.c.l.b16 %v698
    %v763 = vunpack.c.l.b16 %v699
    %v764 = vunpack.c.l.b16 %v700
    %v765 = vunpack.c.l.b16 %v701
    %v766 = vunpack.c.l.b16 %v702
    %v767 = vunpack.c.l.b16 %v703
    %v768 = vunpack.c.l.b16 %v704
    %v769 = vunpack.c.l.b16 %v705
    %v770 = vunpack.c.l.b16 %v706
    %v771 = vunpack.c.l.b16 %v707
    %v772 = vunpack.c.l.b16 %v708
    %v773 = vunpack.c.l.b16 %v709
    %v774 = vunpack.c.l.b16 %v710
    %v775 = vunpack.c.l.b16 %v711
    %v776 = vunpack.c.l.b16 %v712
    %v777 = vunpack.c.l.b16 %v713
    %v778 = vunpack.c.l.b16 %v714
    %v779 = vunpack.c.l.b16 %v715
    %v780 = vunpack.c.l.b16 %v716
    %v781 = vunpack.c.l.b16 %v717
    %v782 = vunpack.c.l.b16 %v718
    %v783 = vunpack.c.l.b16 %v719
    %v784 = vunpack.c.l.b16 %v720
    %v785 = vunpack.c.l.b16 %v721
    %v786 = vunpack.c.l.b16 %v722
    %v787 = vunpack.c.l.b16 %v723
    %v788 = vunpack.c.l.b16 %v724
    %v789 = vunpack.c.l.b16 %v725
    %v790 = vunpack.c.l.b16 %v726
    %v791 = vunpack.c.l.b16 %v727
    %v792 = vunpack.c.l.b16 %v728
    %v793 = vpack.c.b16 %v762, %v761
    %v794 = vpack.c.b16 %v764, %v763
    %v795 = vpack.c.b16 %v766, %v765
    %v796 = vpack.c.b16 %v768, %v767
    %v797 = vpack.c.b16 %v770, %v769
    %v798 = vpack.c.b16 %v772, %v771
    %v799 = vpack.c.b16 %v774, %v773
    %v800 = vpack.c.b16 %v776, %v775
    %v801 = vpack.c.b16 %v778, %v777
    %v802 = vpack.c.b16 %v780, %v779
    %v803 = vpack.c.b16 %v782, %v781
    %v804 = vpack.c.b16 %v784, %v783
    %v805 = vpack.c.b16 %v786, %v785
    %v806 = vpack.c.b16 %v788, %v787
    %v807 = vpack.c.b16 %v790, %v789
    %v808 = vpack.c.b16 %v792, %v791
    %825 = vmatprep.subr.bf16.mxu0 0
    %826 = vmatpush1.bf16.msra.mxu0 %v800
    %827 = vmatprep.subr.bf16.mxu0 0
    %828 = vmatpush1.bf16.msra.mxu0 %v799
    %829 = vmatprep.subr.bf16.mxu0 0
    %830 = vmatpush1.bf16.msra.mxu0 %v798
    %831 = vmatprep.subr.bf16.mxu0 0
    %832 = vmatpush1.bf16.msra.mxu0 %v797
    %833 = vmatprep.subr.bf16.mxu0 0
    %834 = vmatpush1.bf16.msra.mxu0 %v796
    %835 = vmatprep.subr.bf16.mxu0 0
    %836 = vmatpush1.bf16.msra.mxu0 %v795
    %837 = vmatprep.subr.bf16.mxu0 0
    %838 = vmatpush1.bf16.msra.mxu0 %v794
    %839 = vmatprep.subr.bf16.mxu0 0
    %840 = vmatpush1.bf16.msra.mxu0 %v793
    %841 = vmatprep.subr.bf16.mxu0 0
    %842 = vmatpush2.bf16.msra.mxu0 %v808
    %843 = vmatprep.subr.bf16.mxu0 0
    %844 = vmatpush2.bf16.msra.mxu0 %v807
    %845 = vmatprep.subr.bf16.mxu0 0
    %846 = vmatpush2.bf16.msra.mxu0 %v806
    %847 = vmatprep.subr.bf16.mxu0 0
    %848 = vmatpush2.bf16.msra.mxu0 %v805
    %849 = vmatprep.subr.bf16.mxu0 0
    %850 = vmatpush2.bf16.msra.mxu0 %v804
    %851 = vmatprep.subr.bf16.mxu0 0
    %852 = vmatpush2.bf16.msra.mxu0 %v803
    %853 = vmatprep.subr.bf16.mxu0 0
    %854 = vmatpush2.bf16.msra.mxu0 %v802
    %855 = vmatprep.subr.bf16.mxu0 0
    %856 = vmatpush2.bf16.msra.mxu0 %v801
    %857 = vmatprep.mubr.bf16.mxu0 %v696
    %858 = vmatmul.mubr.bf16.gmra.mxu0 %v695
    %v859 = vpop.f32.mrf.mxu0
    %v860 = vadd.f32 0.0, %v859
    %v861 = vpop.f32.mrf.mxu0
    %v862 = vpop.f32.mrf.mxu0
    %v863 = vpop.f32.mrf.mxu0
    %864 = vdwg.mxu0
    %v865 = vpack.c.bf16 %v693, %v693
    %v866 = vpack.c.bf16 %v694, %v694
    %867 = vrot.lane.b32.xlu0 %v793, 127
    %v868 = vpop.permute.xlu0 %867
    %869 = vrot.lane.b32.xlu0 %v794, 127
    %v870 = vpop.permute.xlu0 %869
    %871 = vrot.lane.b32.xlu0 %v795, 127
    %v872 = vpop.permute.xlu0 %871
    %873 = vrot.lane.b32.xlu0 %v796, 127
    %v874 = vpop.permute.xlu0 %873
    %875 = vrot.lane.b32.xlu0 %v797, 127
    %v876 = vpop.permute.xlu0 %875
    %877 = vrot.lane.b32.xlu0 %v798, 127
    %v878 = vpop.permute.xlu0 %877
    %879 = vrot.lane.b32.xlu0 %v799, 127
    %v880 = vpop.permute.xlu0 %879
    %881 = vrot.lane.b32.xlu0 %v800, 127
    %v882 = vpop.permute.xlu0 %881
    %883 = vrot.lane.b32.xlu0 %v801, 127
    %v884 = vpop.permute.xlu0 %883
    %885 = vrot.lane.b32.xlu0 %v802, 127
    %v886 = vpop.permute.xlu0 %885
    %887 = vrot.lane.b32.xlu0 %v803, 127
    %v888 = vpop.permute.xlu0 %887
    %889 = vrot.lane.b32.xlu0 %v804, 127
    %v890 = vpop.permute.xlu0 %889
    %891 = vrot.lane.b32.xlu0 %v805, 127
    %v892 = vpop.permute.xlu0 %891
    %893 = vrot.lane.b32.xlu0 %v806, 127
    %v894 = vpop.permute.xlu0 %893
    %895 = vrot.lane.b32.xlu0 %v807, 127
    %v896 = vpop.permute.xlu0 %895
    %897 = vrot.lane.b32.xlu0 %v808, 127
    %v898 = vpop.permute.xlu0 %897
    %915 = vmatprep.subr.bf16.mxu0 0
    %916 = vmatpush1.bf16.msra.mxu0 %v882
    %917 = vmatprep.subr.bf16.mxu0 0
    %918 = vmatpush1.bf16.msra.mxu0 %v880
    %919 = vmatprep.subr.bf16.mxu0 0
    %920 = vmatpush1.bf16.msra.mxu0 %v878
    %921 = vmatprep.subr.bf16.mxu0 0
    %922 = vmatpush1.bf16.msra.mxu0 %v876
    %923 = vmatprep.subr.bf16.mxu0 0
    %924 = vmatpush1.bf16.msra.mxu0 %v874
    %925 = vmatprep.subr.bf16.mxu0 0
    %926 = vmatpush1.bf16.msra.mxu0 %v872
    %927 = vmatprep.subr.bf16.mxu0 0
    %928 = vmatpush1.bf16.msra.mxu0 %v870
    %929 = vmatprep.subr.bf16.mxu0 0
    %930 = vmatpush1.bf16.msra.mxu0 %v868
    %931 = vmatprep.subr.bf16.mxu0 0
    %932 = vmatpush2.bf16.msra.mxu0 %v898
    %933 = vmatprep.subr.bf16.mxu0 0
    %934 = vmatpush2.bf16.msra.mxu0 %v896
    %935 = vmatprep.subr.bf16.mxu0 0
    %936 = vmatpush2.bf16.msra.mxu0 %v894
    %937 = vmatprep.subr.bf16.mxu0 0
    %938 = vmatpush2.bf16.msra.mxu0 %v892
    %939 = vmatprep.subr.bf16.mxu0 0
    %940 = vmatpush2.bf16.msra.mxu0 %v890
    %941 = vmatprep.subr.bf16.mxu0 0
    %942 = vmatpush2.bf16.msra.mxu0 %v888
    %943 = vmatprep.subr.bf16.mxu0 0
    %944 = vmatpush2.bf16.msra.mxu0 %v886
    %945 = vmatprep.subr.bf16.mxu0 0
    %946 = vmatpush2.bf16.msra.mxu0 %v884
    %947 = vmatprep.mubr.bf16.mxu0 %v866
    %948 = vmatmul.mubr.bf16.gmra.mxu0 %v865
    %v949 = vpop.f32.mrf.mxu0
    %v950 = vadd.f32 0.0, %v949
    %v951 = vpop.f32.mrf.mxu0
    %v952 = vpop.f32.mrf.mxu0
    %v953 = vpop.f32.mrf.mxu0
    %954 = vdwg.mxu0
    %956 = vrot.lane.b32.xlu0 %v950, 1
    %v957 = vpop.permute.xlu0 %956
    %vm959 = vcmask 7168
    %v960 = vsel %vm959, %v860, %v957
    %v961 = vld [vmem:[%s7] sm:$0x1]
    %v963 = vlaneseq
    %v964 = vshrl.u32 %v963, 7
    %v965 = vsub.s32 0, %v964
    %v966 = vrot.slane %v961, %v965
    %v968 = vadd.f32 %v960, %v966
    %969 = vxpose.xlu0.b32.start [1/16] %v968, 128
    %970 = vxpose.xlu0.b32.cont [2/16] 0.0, 128
    %971 = vxpose.xlu0.b32.cont [3/16] 0.0, 128
    %972 = vxpose.xlu0.b32.cont [4/16] 0.0, 128
    %973 = vxpose.xlu0.b32.cont [5/16] 0.0, 128
    %974 = vxpose.xlu0.b32.cont [6/16] 0.0, 128
    %975 = vxpose.xlu0.b32.cont [7/16] 0.0, 128
    %976 = vxpose.xlu0.b32.cont [8/16] 0.0, 128
    %977 = vxpose.xlu0.b32.cont [9/16] 0.0, 128
    %978 = vxpose.xlu0.b32.cont [10/16] 0.0, 128
    %979 = vxpose.xlu0.b32.cont [11/16] 0.0, 128
    %980 = vxpose.xlu0.b32.cont [12/16] 0.0, 128
    %981 = vxpose.xlu0.b32.cont [13/16] 0.0, 128
    %982 = vxpose.xlu0.b32.cont [14/16] 0.0, 128
    %983 = vxpose.xlu0.b32.cont [15/16] 0.0, 128
    %984 = vxpose.xlu0.b32.end [16/16] 0.0, 128
    %v985 = vpop.trf.xlu0
    %v986 = vpop.trf.xlu0
    %v987 = vpop.trf.xlu0
    %v988 = vpop.trf.xlu0
    %v989 = vpop.trf.xlu0
    %v990 = vpop.trf.xlu0
    %v991 = vpop.trf.xlu0
    %v992 = vpop.trf.xlu0
    %v993 = vpop.trf.xlu0
    %v994 = vpop.trf.xlu0
    %v995 = vpop.trf.xlu0
    %v996 = vpop.trf.xlu0
    %v997 = vpop.trf.xlu0
    %v998 = vpop.trf.xlu0
    %v999 = vpop.trf.xlu0
    %v1000 = vpop.trf.xlu0
    %vm1001 = vcmask 58368
    %1002 = vst.msk [vmem:[%s8] sm:$0x3] %vm1001, %v985
    // Predicated region
    $region42: #{critic_forward.1} parent=1 // pred_check
      _
    $region43: #{critic_forward.1} parent=1 // pred_check_branch
      %1004 = sbr.rel (0) target = $region45
    $region44: #{critic_forward.1} parent=1 // pred_region
      _
    $region45: #{critic_forward.1} parent=1 // pred_fallthru
      _
    // Predicated region
    $region46: #{critic_forward.1} parent=1 // pred_check
      _
    $region47: #{critic_forward.1} parent=1 // pred_check_branch
      %1006 = sbr.rel (0) target = $region49
    $region48: #{critic_forward.1} parent=1 // pred_region
      _
    $region49: #{critic_forward.1} parent=1 // pred_fallthru
      _
    %1007 = vsyncpa [#allocation3], 1
    %1008 = vsyncpa [#allocation5], 1

</llo_original>
